<compile_context>
chip_gen: v7x
topology: tpu7x:2x2x1
jax: 0.10.0
libtpu: 0.0.40
codegen_flags: <defaults>
</compile_context>

<pallas_src>
import functools

import jax
import jax.numpy as jnp
from jax import lax
from jax.experimental import pallas as pl
from jax.experimental.pallas import tpu as pltpu


def _knn_weights(q, k, num_neighbors, eps):
    """Dense normalized (TN1, N2) inverse-distance weights of the K nearest keys.

    q: (3, TN1) f32, k: (3, N2) f32.
    """
    tn1 = q.shape[1]
    n2 = k.shape[1]

    # Squared distances, row-shifted by -|q|^2:
    #   dist2 = |q|^2 + |k|^2 - 2 q.k ;  base = |k|^2 - 2 q.k
    # The per-row shift does not change the per-row argmin; the true squared
    # distance is reconstructed only for the selected minima (a (TN1,1) op).
    qq = jnp.sum(q * q, axis=0)[:, None]     # (TN1, 1)
    kk = jnp.sum(k * k, axis=0)[None, :]     # (1, N2)
    k2 = k * (-2.0)                          # fold -2 into the tiny (3, N2) operand
    base = lax.dot_general(
        q, k2, dimension_numbers=(((0,), (0,)), ((), ())),
        preferred_element_type=jnp.float32) + kk            # (TN1, N2)

    lane_iota = lax.broadcasted_iota(jnp.int32, (tn1, n2), 1)

    cur = base
    w_unnorm = jnp.zeros((tn1, n2), jnp.float32)
    inv_sum = jnp.zeros((tn1, 1), jnp.float32)
    for step in range(num_neighbors):                       # K is small & static
        d_min_shift = jnp.min(cur, axis=-1, keepdims=True)              # (TN1, 1)
        masked_iota = jnp.where(cur == d_min_shift, lane_iota, n2)
        idx = jnp.min(masked_iota, axis=-1, keepdims=True)              # (TN1, 1)
        onehot = masked_iota == idx                                     # exact one-hot
        d_min = jnp.maximum(d_min_shift + qq, 0.0)                      # true squared dist
        inv_d = 1.0 / jnp.maximum(d_min, eps)                           # clamp(min=eps)
        inv_sum = inv_sum + inv_d
        w_unnorm = w_unnorm + jnp.where(onehot, inv_d, 0.0)
        if step + 1 < num_neighbors:                        # skip pass on last iter
            cur = jnp.where(onehot, jnp.inf, cur)           # exclude picked

    # Normalize on the small (TN1, 1) tensor, broadcast-multiply once.
    return w_unnorm * pl.reciprocal(inv_sum, approx=False)              # (TN1, N2)


def _weighted_gather(kfeat_ref, w):
    """(C2, N2) x (TN1, N2)^T -> (C2, TN1) on the MXU, f32 accumulation."""
    kf = kfeat_ref[0]
    w_mm = w if kf.dtype == jnp.float32 else w.astype(kf.dtype)
    return lax.dot_general(
        kf, w_mm, dimension_numbers=(((1,), (1,)), ((), ())),
        preferred_element_type=jnp.float32)                             # (C2, TN1)


def _interp_kernel(qxyz_ref, kxyz_ref, kfeat_ref, out_ref, *, num_neighbors, eps):
    """No-query-feature variant: out is (1, C2, TN1)."""
    q = qxyz_ref[0].astype(jnp.float32)      # (3, TN1)
    k = kxyz_ref[0].astype(jnp.float32)      # (3, N2)
    w = _knn_weights(q, k, num_neighbors, eps)
    out_ref[0] = _weighted_gather(kfeat_ref, w).astype(out_ref.dtype)


def _interp_concat_kernel(qxyz_ref, kxyz_ref, kfeat_ref, qfeat_ref, out_ref, *,
                          num_neighbors, eps, c2):
    """Fused interpolate + channel concat: out is (1, C2+C1, TN1)."""
    q = qxyz_ref[0].astype(jnp.float32)      # (3, TN1)
    k = kxyz_ref[0].astype(jnp.float32)      # (3, N2)
    w = _knn_weights(q, k, num_neighbors, eps)
    interp = _weighted_gather(kfeat_ref, w)                             # (C2, TN1)
    out_ref[0, 0:c2, :] = interp.astype(out_ref.dtype)
    out_ref[0, c2:, :] = qfeat_ref[0].astype(out_ref.dtype)             # pass-through


def _pick_tile_n1(n1, n2):
    """Pick an N1 tile: multiple of 128 (or full N1), capped so the dense
    (TN1, N2) f32 intermediates stay small enough for v7x's 64 MiB VMEM."""
    if n1 % 128 != 0:
        return n1                      # full-extent block (no alignment needed)
    budget = max(128, (512 * 1024) // max(n2, 1))   # TN1*N2 <= ~512K elems
    for t in (1024, 768, 512, 384, 256, 128):
        if t <= budget and n1 % t == 0:
            return t
    return n1


def feature_interpolator(query_xyz, key_xyz, query_feature, key_feature,
                         num_neighbors=3, eps=1e-10):
    """Pallas-backed equivalent of FeatureInterpolator.forward.

    query_xyz: (B, 3, N1), key_xyz: (B, 3, N2),
    query_feature: (B, C1, N1) or None, key_feature: (B, C2, N2)
    returns: (B, C2 + C1, N1)   (C1 = 0 if query_feature is None)
    """
    B, _, N1 = query_xyz.shape
    _, _, N2 = key_xyz.shape
    C2 = key_feature.shape[1]
    C1 = 0 if query_feature is None else query_feature.shape[1]

    tn1 = _pick_tile_n1(N1, N2)
    grid = (B, N1 // tn1)

    if query_feature is None:
        out_dtype = key_feature.dtype
    else:
        out_dtype = jnp.result_type(key_feature.dtype, query_feature.dtype)
    out_isize = jnp.dtype(out_dtype).itemsize
    feat_isize = jnp.dtype(key_feature.dtype).itemsize

    # Rough cost estimate so XLA schedules the surrounding graph sensibly.
    flops = 2 * B * N1 * N2 * (3 + C2) + 8 * B * num_neighbors * N1 * N2
    bytes_accessed = (query_xyz.size * jnp.dtype(query_xyz.dtype).itemsize
                      + key_xyz.size * jnp.dtype(key_xyz.dtype).itemsize
                      + key_feature.size * feat_isize
                      + (0 if query_feature is None
                         else query_feature.size * jnp.dtype(query_feature.dtype).itemsize)
                      + B * (C2 + C1) * N1 * out_isize)
    cost = pl.CostEstimate(flops=int(flops), transcendentals=0,
                           bytes_accessed=int(bytes_accessed))

    # VMEM estimate: ~6 live (tn1, N2) f32 intermediates + double-buffered tiles.
    est = (6 * tn1 * N2 * 4
           + 2 * (3 * tn1 + 3 * N2) * 4
           + 2 * C2 * N2 * feat_isize
           + 2 * C1 * tn1 * 4
           + 2 * (C2 + C1) * tn1 * out_isize)
    vmem_limit = int(min(96 * 2**20, max(32 * 2**20, 2 * est)))
    cparams = pltpu.CompilerParams(
        dimension_semantics=("parallel", "parallel"),
        vmem_limit_bytes=vmem_limit)

    qxyz_spec = pl.BlockSpec((1, 3, tn1), lambda b, i: (b, 0, i))
    kxyz_spec = pl.BlockSpec((1, 3, N2), lambda b, i: (b, 0, 0))    # resident across i
    kfeat_spec = pl.BlockSpec((1, C2, N2), lambda b, i: (b, 0, 0))  # resident across i

    if query_feature is None:
        kernel = functools.partial(_interp_kernel,
                                   num_neighbors=int(num_neighbors), eps=float(eps))
        return pl.pallas_call(
            kernel,
            out_shape=jax.ShapeDtypeStruct((B, C2, N1), out_dtype),
            grid=grid,
            in_specs=[qxyz_spec, kxyz_spec, kfeat_spec],
            out_specs=pl.BlockSpec((1, C2, tn1), lambda b, i: (b, 0, i)),
            compiler_params=cparams,
            cost_estimate=cost,
        )(query_xyz, key_xyz, key_feature)

    kernel = functools.partial(_interp_concat_kernel,
                               num_neighbors=int(num_neighbors), eps=float(eps),
                               c2=int(C2))
    return pl.pallas_call(
        kernel,
        out_shape=jax.ShapeDtypeStruct((B, C2 + C1, N1), out_dtype),
        grid=grid,
        in_specs=[qxyz_spec, kxyz_spec, kfeat_spec,
                  pl.BlockSpec((1, C1, tn1), lambda b, i: (b, 0, i))],
        out_specs=pl.BlockSpec((1, C2 + C1, tn1), lambda b, i: (b, 0, i)),
        compiler_params=cparams,
        cost_estimate=cost,
    )(query_xyz, key_xyz, key_feature, query_feature)


def _reference(query_xyz, key_xyz, query_feature, key_feature, num_neighbors, eps):
    """Pure-JAX reference mirroring the torch semantics (for verification)."""
    diff = query_xyz[:, :, :, None] - key_xyz[:, :, None, :]
    dist2 = jnp.sum(diff * diff, axis=1)                               # (B, N1, N2)
    idx = jnp.argsort(dist2, axis=-1)[..., :num_neighbors]            # (B, N1, K)
    d = jnp.take_along_axis(dist2, idx, axis=-1)                       # (B, N1, K)
    inv = 1.0 / jnp.maximum(d, eps)
    w = inv / jnp.sum(inv, axis=-1, keepdims=True)                     # (B, N1, K)
    kf = jnp.take_along_axis(key_feature[:, :, None, :],
                             idx[:, None, :, :], axis=-1)              # (B, C2, N1, K)
    interp = jnp.sum(kf * w[:, None, :, :], axis=-1)                   # (B, C2, N1)
    if query_feature is not None:
        return jnp.concatenate([interp, query_feature], axis=1)
    return interp


def _run_case(key, B, N1, N2, C1, C2, K, eps=1e-10, with_query_feature=True):
    k1, k2, k3, k4 = jax.random.split(key, 4)
    query_xyz = jax.random.normal(k1, (B, 3, N1), jnp.float32)
    key_xyz = jax.random.normal(k2, (B, 3, N2), jnp.float32)
    query_feature = (jax.random.normal(k3, (B, C1, N1), jnp.float32)
                     if with_query_feature else None)
    key_feature = jax.random.normal(k4, (B, C2, N2), jnp.float32)

    out = feature_interpolator(query_xyz, key_xyz, query_feature, key_feature,
                               num_neighbors=K, eps=eps)
    out = jax.block_until_ready(out)
    c1 = C1 if with_query_feature else 0
    assert out.shape == (B, c1 + C2, N1), out.shape

    ref = _reference(query_xyz, key_xyz, query_feature, key_feature, K, eps)
    assert jnp.allclose(out, ref, atol=1e-4, rtol=1e-4), \
        f"mismatch vs reference (B={B}, N1={N1}, N2={N2}, qfeat={with_query_feature})"


if __name__ == "__main__":
    key = jax.random.PRNGKey(0)
    ka, kb, kc = jax.random.split(key, 3)

    # Small shapes consistent with the module (full-N1 block path, fused concat).
    _run_case(ka, B=2, N1=16, N2=8, C1=4, C2=6, K=3)
    # Moderately sized case exercising the tiled path.
    _run_case(kb, B=2, N1=1024, N2=128, C1=8, C2=16, K=3)
    # query_feature=None path (no concat branch).
    _run_case(kc, B=2, N1=16, N2=8, C1=4, C2=6, K=3, with_query_feature=False)

    print("KERNEL_OK")
</pallas_src>

<mosaic_0001>
module attributes {stable_mosaic.version = 11 : i64} {
  func.func @_interp_concat_kernel(%arg0: i32, %arg1: i32, %arg2: memref<1x3x16xf32, #tpu.memory_space<vmem>>, %arg3: memref<1x3x8xf32, #tpu.memory_space<vmem>>, %arg4: memref<1x6x8xf32, #tpu.memory_space<vmem>>, %arg5: memref<1x4x16xf32, #tpu.memory_space<vmem>>, %arg6: memref<1x10x16xf32, #tpu.memory_space<vmem>>) attributes {dimension_semantics = [#tpu.dimension_semantics<parallel>, #tpu.dimension_semantics<parallel>], iteration_bounds = array<i64: 2, 1>, scalar_prefetch = 0 : i64, scratch_operands = 0 : i64, tpu.core_type = #tpu.core_type<tc>, window_params = [{transform_indices = @transform_0, window_bounds = array<i64: 1, 3, 16>}, {transform_indices = @transform_1, window_bounds = array<i64: 1, 3, 8>}, {transform_indices = @transform_2, window_bounds = array<i64: 1, 6, 8>}, {transform_indices = @transform_3, window_bounds = array<i64: 1, 4, 16>}, {transform_indices = @transform_4, window_bounds = array<i64: 1, 10, 16>}]} {
    %c0 = arith.constant 0 : index
    %c0_0 = arith.constant 0 : index
    %c0_1 = arith.constant 0 : index
    %0 = vector.load %arg2[%c0, %c0_0, %c0_1] : memref<1x3x16xf32, #tpu.memory_space<vmem>>, vector<1x3x16xf32>
    %1 = vector.shape_cast %0 : vector<1x3x16xf32> to vector<3x16xf32>
    %c0_2 = arith.constant 0 : index
    %c0_3 = arith.constant 0 : index
    %c0_4 = arith.constant 0 : index
    %2 = vector.load %arg3[%c0_2, %c0_3, %c0_4] : memref<1x3x8xf32, #tpu.memory_space<vmem>>, vector<1x3x8xf32>
    %3 = vector.shape_cast %2 : vector<1x3x8xf32> to vector<3x8xf32>
    %4 = arith.mulf %1, %1 : vector<3x16xf32>
    %cst = arith.constant dense<0.000000e+00> : vector<16xf32>
    %5 = vector.multi_reduction <add>, %4, %cst [0] : vector<3x16xf32> to vector<16xf32>
    %6 = vector.shape_cast %5 : vector<16xf32> to vector<16x1xf32>
    %7 = arith.mulf %3, %3 : vector<3x8xf32>
    %cst_5 = arith.constant dense<0.000000e+00> : vector<8xf32>
    %8 = vector.multi_reduction <add>, %7, %cst_5 [0] : vector<3x8xf32> to vector<8xf32>
    %9 = vector.shape_cast %8 : vector<8xf32> to vector<1x8xf32>
    %cst_6 = arith.constant -2.000000e+00 : f32
    %10 = vector.broadcast %cst_6 : f32 to vector<3x8xf32>
    %11 = arith.mulf %3, %10 : vector<3x8xf32>
    %cst_7 = arith.constant dense<0.000000e+00> : vector<16x8xf32>
    %12 = tpu.matmul %1, %11, %cst_7 {dimension_numbers = #tpu.dot_dimension_numbers<[0], [0], [1], [1], [0, 1, 1, 1], [], []>} : vector<3x16xf32>, vector<3x8xf32>, vector<16x8xf32> -> vector<16x8xf32>
    %13 = vector.broadcast %9 : vector<1x8xf32> to vector<16x8xf32>
    %14 = arith.addf %12, %13 : vector<16x8xf32>
    %15 = tpu.iota {dimensions = array<i32: 1>} : vector<16x8xi32>
    %cst_8 = arith.constant 0.000000e+00 : f32
    %16 = vector.broadcast %cst_8 : f32 to vector<16x8xf32>
    %cst_9 = arith.constant 0.000000e+00 : f32
    %17 = vector.broadcast %cst_9 : f32 to vector<16x1xf32>
    %cst_10 = arith.constant dense<0x7F800000> : vector<16xf32>
    %18 = vector.multi_reduction <minimumf>, %14, %cst_10 [1] : vector<16x8xf32> to vector<16xf32>
    %19 = vector.shape_cast %18 : vector<16xf32> to vector<16x1xf32>
    %20 = vector.broadcast %19 : vector<16x1xf32> to vector<16x8xf32>
    %21 = arith.cmpf oeq, %14, %20 : vector<16x8xf32>
    %c8_i32 = arith.constant 8 : i32
    %22 = vector.broadcast %c8_i32 : i32 to vector<16x8xi32>
    %23 = arith.select %21, %15, %22 : vector<16x8xi1>, vector<16x8xi32>
    %cst_11 = arith.constant dense<2147483647> : vector<16xi32>
    %24 = vector.multi_reduction <minsi>, %23, %cst_11 [1] : vector<16x8xi32> to vector<16xi32>
    %25 = vector.shape_cast %24 : vector<16xi32> to vector<16x1xi32>
    %26 = vector.broadcast %25 : vector<16x1xi32> to vector<16x8xi32>
    %27 = arith.cmpi eq, %23, %26 : vector<16x8xi32>
    %28 = arith.addf %19, %6 : vector<16x1xf32>
    %cst_12 = arith.constant 0.000000e+00 : f32
    %29 = vector.broadcast %cst_12 : f32 to vector<16x1xf32>
    %30 = arith.maximumf %28, %29 : vector<16x1xf32>
    %cst_13 = arith.constant 1.000000e-10 : f32
    %31 = vector.broadcast %cst_13 : f32 to vector<16x1xf32>
    %32 = arith.maximumf %30, %31 : vector<16x1xf32>
    %cst_14 = arith.constant 1.000000e+00 : f32
    %33 = vector.broadcast %cst_14 : f32 to vector<16x1xf32>
    %34 = arith.divf %33, %32 : vector<16x1xf32>
    %35 = arith.addf %17, %34 : vector<16x1xf32>
    %cst_15 = arith.constant 0.000000e+00 : f32
    %36 = vector.shape_cast %34 : vector<16x1xf32> to vector<16x1xf32>
    %37 = vector.broadcast %36 : vector<16x1xf32> to vector<16x8xf32>
    %38 = vector.broadcast %cst_15 : f32 to vector<16x8xf32>
    %39 = arith.select %27, %37, %38 : vector<16x8xi1>, vector<16x8xf32>
    %40 = arith.addf %16, %39 : vector<16x8xf32>
    %cst_16 = arith.constant 0x7F800000 : f32
    %41 = vector.broadcast %cst_16 : f32 to vector<16x8xf32>
    %42 = arith.select %27, %41, %14 : vector<16x8xi1>, vector<16x8xf32>
    %cst_17 = arith.constant dense<0x7F800000> : vector<16xf32>
    %43 = vector.multi_reduction <minimumf>, %42, %cst_17 [1] : vector<16x8xf32> to vector<16xf32>
    %44 = vector.shape_cast %43 : vector<16xf32> to vector<16x1xf32>
    %45 = vector.broadcast %44 : vector<16x1xf32> to vector<16x8xf32>
    %46 = arith.cmpf oeq, %42, %45 : vector<16x8xf32>
    %c8_i32_18 = arith.constant 8 : i32
    %47 = vector.broadcast %c8_i32_18 : i32 to vector<16x8xi32>
    %48 = arith.select %46, %15, %47 : vector<16x8xi1>, vector<16x8xi32>
    %cst_19 = arith.constant dense<2147483647> : vector<16xi32>
    %49 = vector.multi_reduction <minsi>, %48, %cst_19 [1] : vector<16x8xi32> to vector<16xi32>
    %50 = vector.shape_cast %49 : vector<16xi32> to vector<16x1xi32>
    %51 = vector.broadcast %50 : vector<16x1xi32> to vector<16x8xi32>
    %52 = arith.cmpi eq, %48, %51 : vector<16x8xi32>
    %53 = arith.addf %44, %6 : vector<16x1xf32>
    %cst_20 = arith.constant 0.000000e+00 : f32
    %54 = vector.broadcast %cst_20 : f32 to vector<16x1xf32>
    %55 = arith.maximumf %53, %54 : vector<16x1xf32>
    %cst_21 = arith.constant 1.000000e-10 : f32
    %56 = vector.broadcast %cst_21 : f32 to vector<16x1xf32>
    %57 = arith.maximumf %55, %56 : vector<16x1xf32>
    %cst_22 = arith.constant 1.000000e+00 : f32
    %58 = vector.broadcast %cst_22 : f32 to vector<16x1xf32>
    %59 = arith.divf %58, %57 : vector<16x1xf32>
    %60 = arith.addf %35, %59 : vector<16x1xf32>
    %cst_23 = arith.constant 0.000000e+00 : f32
    %61 = vector.shape_cast %59 : vector<16x1xf32> to vector<16x1xf32>
    %62 = vector.broadcast %61 : vector<16x1xf32> to vector<16x8xf32>
    %63 = vector.broadcast %cst_23 : f32 to vector<16x8xf32>
    %64 = arith.select %52, %62, %63 : vector<16x8xi1>, vector<16x8xf32>
    %65 = arith.addf %40, %64 : vector<16x8xf32>
    %cst_24 = arith.constant 0x7F800000 : f32
    %66 = vector.broadcast %cst_24 : f32 to vector<16x8xf32>
    %67 = arith.select %52, %66, %42 : vector<16x8xi1>, vector<16x8xf32>
    %cst_25 = arith.constant dense<0x7F800000> : vector<16xf32>
    %68 = vector.multi_reduction <minimumf>, %67, %cst_25 [1] : vector<16x8xf32> to vector<16xf32>
    %69 = vector.shape_cast %68 : vector<16xf32> to vector<16x1xf32>
    %70 = vector.broadcast %69 : vector<16x1xf32> to vector<16x8xf32>
    %71 = arith.cmpf oeq, %67, %70 : vector<16x8xf32>
    %c8_i32_26 = arith.constant 8 : i32
    %72 = vector.broadcast %c8_i32_26 : i32 to vector<16x8xi32>
    %73 = arith.select %71, %15, %72 : vector<16x8xi1>, vector<16x8xi32>
    %cst_27 = arith.constant dense<2147483647> : vector<16xi32>
    %74 = vector.multi_reduction <minsi>, %73, %cst_27 [1] : vector<16x8xi32> to vector<16xi32>
    %75 = vector.shape_cast %74 : vector<16xi32> to vector<16x1xi32>
    %76 = vector.broadcast %75 : vector<16x1xi32> to vector<16x8xi32>
    %77 = arith.cmpi eq, %73, %76 : vector<16x8xi32>
    %78 = arith.addf %69, %6 : vector<16x1xf32>
    %cst_28 = arith.constant 0.000000e+00 : f32
    %79 = vector.broadcast %cst_28 : f32 to vector<16x1xf32>
    %80 = arith.maximumf %78, %79 : vector<16x1xf32>
    %cst_29 = arith.constant 1.000000e-10 : f32
    %81 = vector.broadcast %cst_29 : f32 to vector<16x1xf32>
    %82 = arith.maximumf %80, %81 : vector<16x1xf32>
    %cst_30 = arith.constant 1.000000e+00 : f32
    %83 = vector.broadcast %cst_30 : f32 to vector<16x1xf32>
    %84 = arith.divf %83, %82 : vector<16x1xf32>
    %85 = arith.addf %60, %84 : vector<16x1xf32>
    %cst_31 = arith.constant 0.000000e+00 : f32
    %86 = vector.shape_cast %84 : vector<16x1xf32> to vector<16x1xf32>
    %87 = vector.broadcast %86 : vector<16x1xf32> to vector<16x8xf32>
    %88 = vector.broadcast %cst_31 : f32 to vector<16x8xf32>
    %89 = arith.select %77, %87, %88 : vector<16x8xi1>, vector<16x8xf32>
    %90 = arith.addf %65, %89 : vector<16x8xf32>
    %91 = tpu.reciprocal %85 : vector<16x1xf32> -> vector<16x1xf32>
    %92 = vector.broadcast %91 : vector<16x1xf32> to vector<16x8xf32>
    %93 = arith.mulf %90, %92 : vector<16x8xf32>
    %c0_32 = arith.constant 0 : index
    %c0_33 = arith.constant 0 : index
    %c0_34 = arith.constant 0 : index
    %94 = vector.load %arg4[%c0_32, %c0_33, %c0_34] : memref<1x6x8xf32, #tpu.memory_space<vmem>>, vector<1x6x8xf32>
    %95 = vector.shape_cast %94 : vector<1x6x8xf32> to vector<6x8xf32>
    %cst_35 = arith.constant dense<0.000000e+00> : vector<6x16xf32>
    %96 = tpu.matmul %95, %93, %cst_35 {dimension_numbers = #tpu.dot_dimension_numbers<[1], [1], [0], [0], [0, 0, 1, 0], [], []>} : vector<6x8xf32>, vector<16x8xf32>, vector<6x16xf32> -> vector<6x16xf32>
    %c0_36 = arith.constant 0 : index
    %c0_37 = arith.constant 0 : index
    %c0_38 = arith.constant 0 : index
    %97 = vector.load %arg6[%c0_36, %c0_37, %c0_38] : memref<1x10x16xf32, #tpu.memory_space<vmem>>, vector<1x6x16xf32>
    %98 = vector.shape_cast %97 : vector<1x6x16xf32> to vector<6x16xf32>
    %99 = vector.shape_cast %96 : vector<6x16xf32> to vector<1x6x16xf32>
    tpu.vector_store %arg6[%c0_36, %c0_37, %c0_38], %99 {strides = array<i32>} : memref<1x10x16xf32, #tpu.memory_space<vmem>>, vector<1x6x16xf32>,
    %c0_39 = arith.constant 0 : index
    %c0_40 = arith.constant 0 : index
    %c0_41 = arith.constant 0 : index
    %100 = vector.load %arg5[%c0_39, %c0_40, %c0_41] : memref<1x4x16xf32, #tpu.memory_space<vmem>>, vector<1x4x16xf32>
    %101 = vector.shape_cast %100 : vector<1x4x16xf32> to vector<4x16xf32>
    %c0_42 = arith.constant 0 : index
    %c6 = arith.constant 6 : index
    %c0_43 = arith.constant 0 : index
    %102 = vector.load %arg6[%c0_42, %c6, %c0_43] : memref<1x10x16xf32, #tpu.memory_space<vmem>>, vector<1x4x16xf32>
    %103 = vector.shape_cast %102 : vector<1x4x16xf32> to vector<4x16xf32>
    %104 = vector.shape_cast %101 : vector<4x16xf32> to vector<1x4x16xf32>
    tpu.vector_store %arg6[%c0_42, %c6, %c0_43], %104 {strides = array<i32>} : memref<1x10x16xf32, #tpu.memory_space<vmem>>, vector<1x4x16xf32>,
    return
  }
  func.func @transform_0(%arg0: i32, %arg1: i32) -> (i32, i32, i32) {
    %c0_i32 = arith.constant 0 : i32
    %c0_i32_0 = arith.constant 0 : i32
    return %arg0, %c0_i32, %arg1 : i32, i32, i32
  }
  func.func @transform_1(%arg0: i32, %arg1: i32) -> (i32, i32, i32) {
    %c0_i32 = arith.constant 0 : i32
    %c0_i32_0 = arith.constant 0 : i32
    %c0_i32_1 = arith.constant 0 : i32
    return %arg0, %c0_i32, %c0_i32_0 : i32, i32, i32
  }
  func.func @transform_2(%arg0: i32, %arg1: i32) -> (i32, i32, i32) {
    %c0_i32 = arith.constant 0 : i32
    %c0_i32_0 = arith.constant 0 : i32
    %c0_i32_1 = arith.constant 0 : i32
    return %arg0, %c0_i32, %c0_i32_0 : i32, i32, i32
  }
  func.func @transform_3(%arg0: i32, %arg1: i32) -> (i32, i32, i32) {
    %c0_i32 = arith.constant 0 : i32
    %c0_i32_0 = arith.constant 0 : i32
    return %arg0, %c0_i32, %arg1 : i32, i32, i32
  }
  func.func @transform_4(%arg0: i32, %arg1: i32) -> (i32, i32, i32) {
    %c0_i32 = arith.constant 0 : i32
    %c0_i32_0 = arith.constant 0 : i32
    return %arg0, %c0_i32, %arg1 : i32, i32, i32
  }
}

</mosaic_0001>

<llo_original>
// kernel: tpu_custom_call.1
$region0: #{tpu_custom_call.1}
  #allocation0 [shape = 'u32[]', space=smem, size = 0x4, offset = 0x4, fixed_abs, tag = 'smem constant byte address 0x4 - core index']
  #allocation1 [shape = 'u32[144,128]{1,0:T(1,128)}', space=vmem, size = 0x12000, scoped, tag = 'internal scratch']
  %s0 = inlined_call_operand.vmem [shape: f32[2,3,16], index: 0, kind: input, shape index: {}]
  %s1 = inlined_call_operand.vmem [shape: f32[2,3,8], index: 1, kind: input, shape index: {}]
  %s2 = inlined_call_operand.vmem [shape: f32[2,6,8], index: 2, kind: input, shape index: {}]
  %s3 = inlined_call_operand.vmem [shape: f32[2,4,16], index: 3, kind: input, shape index: {}]
  %s4 = inlined_call_operand.vmem [shape: f32[2,10,16], index: 4, kind: output, shape index: {}]
  %s5 = sld [smem:[#allocation0]]
  $region49: #{tpu_custom_call.1} parent=0
    _
  %s7 = ssub.s32 1, %s5
  %s8 = scalar_select 0, %s7, %s5
  loop: start=0, step=1, limit=4
  $region2: #{tpu_custom_call.1} parent=0 // loop_pre_header
    _
  $region3: #{tpu_custom_call.1} parent=0 // loop_header
    %s10 = sphi 0, %s14
    %p11 = scmp.ge.s32.totalorder %s10, 4
    %s17 = sphi 0, %s29
    %s18 = sphi 0, %s25
    %s19 = sphi 0, %s17
    %s20 = sphi 0, %s18
    %s21 = sphi 0, %s19
    %s22 = sphi 0, %s20
    %s34 = sphi 0, %s36
    %s37 = sphi 0, %s34
    %s38 = sphi 0, %s37
    %s54 = sphi 0, %s38
    %s60 = sphi 0, %s62
    %s63 = sphi 0, %s60
    %s64 = sphi 0, %s63
    %s80 = sphi 0, %s64
    %s86 = sphi 0, %s88
    %s89 = sphi 0, %s86
    %s90 = sphi 0, %s89
    %s106 = sphi 0, %s90
    %s114 = sphi 0, %s116
    %s117 = sphi 0, %s114
    %s118 = sphi 0, %s117
    %s134 = sphi 0, %s118
    %s142 = sphi 0, %s144
    %s145 = sphi 0, %s142
    %s146 = sphi 0, %s145
    %s162 = sphi 0, %s146
  $region4: #{tpu_custom_call.1} parent=0 // loop_header_branch
    %13 = sbr.rel (%p11) target = $region8
  $region5: #{tpu_custom_call.1} parent=0 // loop_body
    %s15 = ssub.s32 %s10, 1
    %s16 = ssub.s32 %s10, 2
    %s23 = sadd.s32 1, %s18
    %p24 = scmp.ge.s32.totalorder %s23, 1
    %s25 = scalar_select %p24, 0, %s23
    %s26 = sadd.s32 1, %s17
    %s27 = scalar_select %p24, %s26, %s17
    %p28 = scmp.ge.s32.totalorder %s27, 2
    %s29 = scalar_select %p28, 0, %s27
    %s30 = ssub.s32 %s17, %s29
    %s31 = ssub.s32 %s18, %s25
    %s32 = sor.u32 %s30, %s31
    %p33 = scmp.eq.s32.totalorder %s32, 0
    %s35 = sadd.s32 %s34, 1
    %s36 = scalar_select %p33, %s34, %s35
    %p39 = pneg %p33
    %p40 = scmp.eq.s32.totalorder %s10, 1
    %p41 = por %p39, %p40
    %p42 = scmp.ne.s32.totalorder %s34, %s37
    %p43 = scmp.eq.s32.totalorder %s10, 0
    %p44 = por %p42, %p43
    %p45 = scmp.ne.s32.totalorder %s34, %s37
    %p46 = scmp.eq.s32.totalorder %s15, 1
    %p47 = por %p45, %p46
    %p48 = scmp.ne.s32.totalorder %s37, %s38
    %p49 = scmp.eq.s32.totalorder %s15, 0
    %p50 = por %p48, %p49
    %p51 = scmp.ne.s32.totalorder %s37, %s38
    %p52 = scmp.eq.s32.totalorder %s16, 1
    %p53 = por %p51, %p52
    %p55 = scmp.ne.s32.totalorder %s38, %s54
    %p56 = scmp.eq.s32.totalorder %s16, 0
    %p57 = por %p55, %p56
    %s58 = ssub.s32 %s17, %s29
    %p59 = scmp.eq.s32.totalorder %s58, 0
    %s61 = sadd.s32 %s60, 1
    %s62 = scalar_select %p59, %s60, %s61
    %p65 = pneg %p59
    %p66 = scmp.eq.s32.totalorder %s10, 1
    %p67 = por %p65, %p66
    %p68 = scmp.ne.s32.totalorder %s60, %s63
    %p69 = scmp.eq.s32.totalorder %s10, 0
    %p70 = por %p68, %p69
    %p71 = scmp.ne.s32.totalorder %s60, %s63
    %p72 = scmp.eq.s32.totalorder %s15, 1
    %p73 = por %p71, %p72
    %p74 = scmp.ne.s32.totalorder %s63, %s64
    %p75 = scmp.eq.s32.totalorder %s15, 0
    %p76 = por %p74, %p75
    %p77 = scmp.ne.s32.totalorder %s63, %s64
    %p78 = scmp.eq.s32.totalorder %s16, 1
    %p79 = por %p77, %p78
    %p81 = scmp.ne.s32.totalorder %s64, %s80
    %p82 = scmp.eq.s32.totalorder %s16, 0
    %p83 = por %p81, %p82
    %s84 = ssub.s32 %s17, %s29
    %p85 = scmp.eq.s32.totalorder %s84, 0
    %s87 = sadd.s32 %s86, 1
    %s88 = scalar_select %p85, %s86, %s87
    %p91 = pneg %p85
    %p92 = scmp.eq.s32.totalorder %s10, 1
    %p93 = por %p91, %p92
    %p94 = scmp.ne.s32.totalorder %s86, %s89
    %p95 = scmp.eq.s32.totalorder %s10, 0
    %p96 = por %p94, %p95
    %p97 = scmp.ne.s32.totalorder %s86, %s89
    %p98 = scmp.eq.s32.totalorder %s15, 1
    %p99 = por %p97, %p98
    %p100 = scmp.ne.s32.totalorder %s89, %s90
    %p101 = scmp.eq.s32.totalorder %s15, 0
    %p102 = por %p100, %p101
    %p103 = scmp.ne.s32.totalorder %s89, %s90
    %p104 = scmp.eq.s32.totalorder %s16, 1
    %p105 = por %p103, %p104
    %p107 = scmp.ne.s32.totalorder %s90, %s106
    %p108 = scmp.eq.s32.totalorder %s16, 0
    %p109 = por %p107, %p108
    %s110 = ssub.s32 %s17, %s29
    %s111 = ssub.s32 %s18, %s25
    %s112 = sor.u32 %s110, %s111
    %p113 = scmp.eq.s32.totalorder %s112, 0
    %s115 = sadd.s32 %s114, 1
    %s116 = scalar_select %p113, %s114, %s115
    %p119 = pneg %p113
    %p120 = scmp.eq.s32.totalorder %s10, 1
    %p121 = por %p119, %p120
    %p122 = scmp.ne.s32.totalorder %s114, %s117
    %p123 = scmp.eq.s32.totalorder %s10, 0
    %p124 = por %p122, %p123
    %p125 = scmp.ne.s32.totalorder %s114, %s117
    %p126 = scmp.eq.s32.totalorder %s15, 1
    %p127 = por %p125, %p126
    %p128 = scmp.ne.s32.totalorder %s117, %s118
    %p129 = scmp.eq.s32.totalorder %s15, 0
    %p130 = por %p128, %p129
    %p131 = scmp.ne.s32.totalorder %s117, %s118
    %p132 = scmp.eq.s32.totalorder %s16, 1
    %p133 = por %p131, %p132
    %p135 = scmp.ne.s32.totalorder %s118, %s134
    %p136 = scmp.eq.s32.totalorder %s16, 0
    %p137 = por %p135, %p136
    %s138 = ssub.s32 %s17, %s29
    %s139 = ssub.s32 %s18, %s25
    %s140 = sor.u32 %s138, %s139
    %p141 = scmp.eq.s32.totalorder %s140, 0
    %s143 = sadd.s32 %s142, 1
    %s144 = scalar_select %p141, %s142, %s143
    %p147 = pneg %p141
    %p148 = scmp.eq.s32.totalorder %s10, 1
    %p149 = por %p147, %p148
    %p150 = scmp.ne.s32.totalorder %s142, %s145
    %p151 = scmp.eq.s32.totalorder %s10, 0
    %p152 = por %p150, %p151
    %p153 = scmp.ne.s32.totalorder %s142, %s145
    %p154 = scmp.eq.s32.totalorder %s15, 1
    %p155 = por %p153, %p154
    %p156 = scmp.ne.s32.totalorder %s145, %s146
    %p157 = scmp.eq.s32.totalorder %s15, 0
    %p158 = por %p156, %p157
    %p159 = scmp.ne.s32.totalorder %s145, %s146
    %p160 = scmp.eq.s32.totalorder %s16, 1
    %p161 = por %p159, %p160
    %p163 = scmp.ne.s32.totalorder %s146, %s162
    %p164 = scmp.eq.s32.totalorder %s16, 0
    %p165 = por %p163, %p164
    %p166 = scmp.le.s32.totalorder 1, %s10
    %p167 = scmp.lt.s32.totalorder %s10, 3
    %p168 = pnand %p166, %p167
    %p169 = pneg %p168
    // Predicated region
    $region9: #{tpu_custom_call.1} parent=5 // pred_check
      _
    $region10: #{tpu_custom_call.1} parent=5 // pred_check_branch
      %171 = sbr.rel (%p168) target = $region12
    $region11: #{tpu_custom_call.1} parent=5 // pred_region
      %s172 = ssub.s32 %s10, 1
    $region12: #{tpu_custom_call.1} parent=5 // pred_fallthru
      _
    %p173 = scmp.lt.s32.totalorder %s10, 2
    // Predicated region
    $region13: #{tpu_custom_call.1} parent=5 // pred_check
      %p174 = pneg %p173
    $region14: #{tpu_custom_call.1} parent=5 // pred_check_branch
      %176 = sbr.rel (%p174) target = $region16
    $region15: #{tpu_custom_call.1} parent=5 // pred_region
      // Predicated region
      $region17: #{tpu_custom_call.1} parent=15 // pred_check
        %p177 = pneg %p44
      $region18: #{tpu_custom_call.1} parent=15 // pred_check_branch
        %179 = sbr.rel (%p177) target = $region20
      $region19: #{tpu_custom_call.1} parent=15 // pred_region
        %p180 = scmp.lt.s32.totalorder %s17, 1
        %s181 = scalar_select %p180, %s17, 1
        %p182 = scmp.lt.s32.totalorder %s18, 0
        %s183 = scalar_select %p182, %s18, 0
        %s184 = sadd.s32 %s183, %s181
        %s185 = smul.addr %s184, 4
        %s186 = scalar_lea.vmem %s0, %s185
      $region20: #{tpu_custom_call.1} parent=15 // pred_fallthru
        _
      // Predicated region
      $region21: #{tpu_custom_call.1} parent=15 // pred_check
        %p187 = pneg %p70
      $region22: #{tpu_custom_call.1} parent=15 // pred_check_branch
        %189 = sbr.rel (%p187) target = $region24
      $region23: #{tpu_custom_call.1} parent=15 // pred_region
        %p190 = scmp.lt.s32.totalorder %s17, 1
        %s191 = scalar_select %p190, %s17, 1
        %s192 = smul.addr %s191, 4
        %s193 = scalar_lea.vmem %s1, %s192
      $region24: #{tpu_custom_call.1} parent=15 // pred_fallthru
        _
      // Predicated region
      $region25: #{tpu_custom_call.1} parent=15 // pred_check
        %p194 = pneg %p96
      $region26: #{tpu_custom_call.1} parent=15 // pred_check_branch
        %196 = sbr.rel (%p194) target = $region28
      $region27: #{tpu_custom_call.1} parent=15 // pred_region
        %p197 = scmp.lt.s32.totalorder %s17, 1
        %s198 = scalar_select %p197, %s17, 1
        %s199 = smul.addr %s198, 8
        %s200 = scalar_lea.vmem %s2, %s199
      $region28: #{tpu_custom_call.1} parent=15 // pred_fallthru
        _
      // Predicated region
      $region29: #{tpu_custom_call.1} parent=15 // pred_check
        %p201 = pneg %p124
      $region30: #{tpu_custom_call.1} parent=15 // pred_check_branch
        %203 = sbr.rel (%p201) target = $region32
      $region31: #{tpu_custom_call.1} parent=15 // pred_region
        %p204 = scmp.lt.s32.totalorder %s17, 1
        %s205 = scalar_select %p204, %s17, 1
        %p206 = scmp.lt.s32.totalorder %s18, 0
        %s207 = scalar_select %p206, %s18, 0
        %s208 = sadd.s32 %s207, %s205
        %s209 = smul.addr %s208, 4
        %s210 = scalar_lea.vmem %s3, %s209
      $region32: #{tpu_custom_call.1} parent=15 // pred_fallthru
        _
    $region16: #{tpu_custom_call.1} parent=5 // pred_fallthru
      _
    %p211 = scmp.le.s32.totalorder 1, %s10
    %p212 = scmp.lt.s32.totalorder %s10, 3
    %p213 = pnand %p211, %p212
    %p214 = pneg %p213
    // Predicated region
    $region33: #{tpu_custom_call.1} parent=5 // pred_check
      _
    $region34: #{tpu_custom_call.1} parent=5 // pred_check_branch
      %216 = sbr.rel (%p213) target = $region36
    $region35: #{tpu_custom_call.1} parent=5 // pred_region
      %s217 = ssub.s32 %s10, 1
      %p218 = scmp.lt.s32.totalorder %s19, 1
      %s219 = scalar_select %p218, %s19, 1
      %p220 = scmp.lt.s32.totalorder %s20, 0
      %s221 = scalar_select %p220, %s20, 0
      %s222 = sadd.s32 %s221, %s219
      %s223 = smul.addr %s222, 4
      %s224 = scalar_lea.vmem %s0, %s223
      %p225 = pneg %p50
      %p226 = pneg %p47
      %p227 = scmp.lt.s32.totalorder %s19, 1
      %s228 = scalar_select %p227, %s19, 1
      %s229 = smul.addr %s228, 4
      %s230 = scalar_lea.vmem %s1, %s229
      %p231 = pneg %p76
      %p232 = pneg %p73
      %p233 = scmp.lt.s32.totalorder %s19, 1
      %s234 = scalar_select %p233, %s19, 1
      %s235 = smul.addr %s234, 8
      %s236 = scalar_lea.vmem %s2, %s235
      %p237 = pneg %p102
      %p238 = pneg %p99
      %p239 = scmp.lt.s32.totalorder %s19, 1
      %s240 = scalar_select %p239, %s19, 1
      %p241 = scmp.lt.s32.totalorder %s20, 0
      %s242 = scalar_select %p241, %s20, 0
      %s243 = sadd.s32 %s242, %s240
      %s244 = smul.addr %s243, 4
      %s245 = scalar_lea.vmem %s3, %s244
      %p246 = pneg %p130
      %p247 = pneg %p127
      %p248 = pneg %p158
      %p249 = pneg %p155
      %p250 = scmp.lt.s32.totalorder %s19, 1
      %s251 = scalar_select %p250, %s19, 1
      %p252 = scmp.lt.s32.totalorder %s20, 0
      %s253 = scalar_select %p252, %s20, 0
      %s254 = smul.addr %s251, 2
      %s255 = sadd.s32 %s253, %s254
      %s256 = smul.addr %s255, 8
      %s257 = scalar_lea.vmem %s4, %s256
      %p258 = scmp.lt.s32.totalorder %s19, 1
      %s259 = scalar_select %p258, %s19, 1
      %p260 = scmp.lt.s32.totalorder %s20, 0
      %s261 = scalar_select %p260, %s20, 0
      %s262 = sadd.s32 %s261, %s259
      %s263 = smul.addr %s262, 4
      %s264 = scalar_lea.vmem %s0, %s263
      %p265 = scmp.lt.s32.totalorder %s19, 1
      %s266 = scalar_select %p265, %s19, 1
      %s267 = smul.addr %s266, 4
      %s268 = scalar_lea.vmem %s1, %s267
      %p269 = scmp.lt.s32.totalorder %s19, 1
      %s270 = scalar_select %p269, %s19, 1
      %s271 = smul.addr %s270, 8
      %s272 = scalar_lea.vmem %s2, %s271
      %p273 = scmp.lt.s32.totalorder %s19, 1
      %s274 = scalar_select %p273, %s19, 1
      %p275 = scmp.lt.s32.totalorder %s20, 0
      %s276 = scalar_select %p275, %s20, 0
      %s277 = sadd.s32 %s276, %s274
      %s278 = smul.addr %s277, 4
      %s279 = scalar_lea.vmem %s3, %s278
      %p280 = scmp.lt.s32.totalorder %s19, 1
      %s281 = scalar_select %p280, %s19, 1
      %p282 = scmp.lt.s32.totalorder %s20, 0
      %s283 = scalar_select %p282, %s20, 0
      %s284 = smul.addr %s281, 2
      %s285 = sadd.s32 %s283, %s284
      %s286 = smul.addr %s285, 8
      %s287 = scalar_lea.vmem %s4, %s286
      %v288 = vld [vmem:[%s264] sm:$0x7]
      %v289 = vld [vmem:[%s268] sm:$0x7]
      %v290 = vmul.f32 %v288, %v288
      %vm291 = vcmask 124928
      %v292 = vsel %vm291, %v290, 0.0
      %v293 = vrot.slane %v292, 4
      %v294 = vadd.f32 %v292, %v293
      %v295 = vrot.slane %v294, 2
      %v296 = vadd.f32 %v294, %v295
      %v297 = vrot.slane %v296, 1
      %v298 = vadd.f32 %v296, %v297
      %300 = vbcast.lane.b32.xlu0 %v298, 256
      %v301 = vpop.permute.xlu0 %300
      %s303 = sor.u32 256, 8
      %304 = vbcast.lane.b32.xlu0 %v298, %s303
      %v305 = vpop.permute.xlu0 %304
      %v306 = vmul.f32 %v289, %v289
      %vm307 = vcmask 59392
      %v308 = vsel %vm307, %v306, 0.0
      %v309 = vrot.slane %v308, 4
      %v310 = vadd.f32 %v308, %v309
      %v311 = vrot.slane %v310, 2
      %v312 = vadd.f32 %v310, %v311
      %v313 = vrot.slane %v312, 1
      %v314 = vadd.f32 %v312, %v313
      %v315 = vmul.f32 %v289, -2.0
      %316 = vxpose.xlu0.b32.start [1/16] %v288, 128
      %317 = vxpose.xlu0.b32.cont [2/16] 0.0, 128
      %318 = vxpose.xlu0.b32.cont [3/16] 0.0, 128
      %319 = vxpose.xlu0.b32.cont [4/16] 0.0, 128
      %320 = vxpose.xlu0.b32.cont [5/16] 0.0, 128
      %321 = vxpose.xlu0.b32.cont [6/16] 0.0, 128
      %322 = vxpose.xlu0.b32.cont [7/16] 0.0, 128
      %323 = vxpose.xlu0.b32.cont [8/16] 0.0, 128
      %324 = vxpose.xlu0.b32.cont [9/16] 0.0, 128
      %325 = vxpose.xlu0.b32.cont [10/16] 0.0, 128
      %326 = vxpose.xlu0.b32.cont [11/16] 0.0, 128
      %327 = vxpose.xlu0.b32.cont [12/16] 0.0, 128
      %328 = vxpose.xlu0.b32.cont [13/16] 0.0, 128
      %329 = vxpose.xlu0.b32.cont [14/16] 0.0, 128
      %330 = vxpose.xlu0.b32.cont [15/16] 0.0, 128
      %331 = vxpose.xlu0.b32.end [16/16] 0.0, 128
      %v332 = vpop.trf.xlu0
      %v333 = vpop.trf.xlu0
      %v334 = vpop.trf.xlu0
      %v335 = vpop.trf.xlu0
      %v336 = vpop.trf.xlu0
      %v337 = vpop.trf.xlu0
      %v338 = vpop.trf.xlu0
      %v339 = vpop.trf.xlu0
      %v340 = vpop.trf.xlu0
      %v341 = vpop.trf.xlu0
      %v342 = vpop.trf.xlu0
      %v343 = vpop.trf.xlu0
      %v344 = vpop.trf.xlu0
      %v345 = vpop.trf.xlu0
      %v346 = vpop.trf.xlu0
      %v347 = vpop.trf.xlu0
      %vm348 = vcmask 23552
      %v350 = vsel %vm348, %v332, 0
      %v353 = vsel %vm348, %v333, 0
      %vm355 = vcmask 1042432
      %v357 = vsel %vm355, %v315, 0
      %359 = vmatprep.subr.mxu0 0.0
      %360 = vmatpush1.msra.mxu0 %v357
      %361 = vmatprep.subr.mxu0 0.0
      %362 = vmatpush1.msra.mxu0 0.0
      %363 = vmatprep.subr.mxu0 0.0
      %364 = vmatpush1.msra.mxu0 0.0
      %365 = vmatprep.subr.mxu0 0.0
      %366 = vmatpush1.msra.mxu0 0.0
      %367 = vmatprep.subr.mxu0 0.0
      %368 = vmatpush1.msra.mxu0 0.0
      %369 = vmatprep.subr.mxu0 0.0
      %370 = vmatpush1.msra.mxu0 0.0
      %371 = vmatprep.subr.mxu0 0.0
      %372 = vmatpush1.msra.mxu0 0.0
      %373 = vmatprep.subr.mxu0 0.0
      %374 = vmatpush1.msra.mxu0 0.0
      %375 = vmatprep.subr.mxu0 0.0
      %376 = vmatpush1.msra.mxu0 0.0
      %377 = vmatprep.subr.mxu0 0.0
      %378 = vmatpush1.msra.mxu0 0.0
      %379 = vmatprep.subr.mxu0 0.0
      %380 = vmatpush1.msra.mxu0 0.0
      %381 = vmatprep.subr.mxu0 0.0
      %382 = vmatpush1.msra.mxu0 0.0
      %383 = vmatprep.subr.mxu0 0.0
      %384 = vmatpush1.msra.mxu0 0.0
      %385 = vmatprep.subr.mxu0 0.0
      %386 = vmatpush1.msra.mxu0 0.0
      %387 = vmatprep.subr.mxu0 0.0
      %388 = vmatpush1.msra.mxu0 0.0
      %389 = vmatprep.subr.mxu0 0.0
      %390 = vmatpush1.msra.mxu0 0.0
      %391 = vmatprep.subr.mxu0 0.0
      %392 = vmatpush1.msra.mxu0 0.0
      %393 = vmatprep.subr.mxu0 0.0
      %394 = vmatpush1.msra.mxu0 0.0
      %395 = vmatprep.subr.mxu0 0.0
      %396 = vmatpush1.msra.mxu0 0.0
      %397 = vmatprep.subr.mxu0 0.0
      %398 = vmatpush1.msra.mxu0 0.0
      %399 = vmatprep.subr.mxu0 0.0
      %400 = vmatpush1.msra.mxu0 0.0
      %401 = vmatprep.subr.mxu0 0.0
      %402 = vmatpush1.msra.mxu0 0.0
      %403 = vmatprep.subr.mxu0 0.0
      %404 = vmatpush1.msra.mxu0 0.0
      %405 = vmatprep.subr.mxu0 0.0
      %406 = vmatpush1.msra.mxu0 0.0
      %407 = vmatprep.subr.mxu0 0.0
      %408 = vmatpush1.msra.mxu0 0.0
      %409 = vmatprep.subr.mxu0 0.0
      %410 = vmatpush1.msra.mxu0 0.0
      %411 = vmatprep.subr.mxu0 0.0
      %412 = vmatpush1.msra.mxu0 0.0
      %413 = vmatprep.subr.mxu0 0.0
      %414 = vmatpush1.msra.mxu0 0.0
      %415 = vmatprep.subr.mxu0 0.0
      %416 = vmatpush1.msra.mxu0 0.0
      %417 = vmatprep.subr.mxu0 0.0
      %418 = vmatpush1.msra.mxu0 0.0
      %419 = vmatprep.subr.mxu0 0.0
      %420 = vmatpush1.msra.mxu0 0.0
      %421 = vmatprep.subr.mxu0 0.0
      %422 = vmatpush1.msra.mxu0 0.0
      %423 = vmatprep.mubr.f32.mxu0 0.0
      %424 = vmatmul.mubr.f32.gmra.mrb[0].mxu0 %v350
      %v425 = vpop.f32.mrb[0].mxu0
      %v426 = vadd.f32 %v314, %v425
      %v427 = vpop.f32.mrb[0].mxu0
      %428 = vmatprep.mubr.f32.mxu0 0.0
      %429 = vmatmul.mubr.f32.gmra.mrb[0].mxu0 %v353
      %v430 = vpop.f32.mrb[0].mxu0
      %v431 = vadd.f32 %v314, %v430
      %v432 = vpop.f32.mrb[0].mxu0
      %433 = vdwg.mxu0
      %v434 = vlaneseq
      %v435 = vand.u32 %v434, 127
      %vm436 = vcmask 64512
      %v437 = vsel %vm436, %v426, inf
      %438 = vmin.xlane.f32.xlu0 %v437
      %v439 = vpop.xlane.xlu0 %438
      %v440 = vsel %vm436, %v431, inf
      %441 = vmin.xlane.f32.xlu0 %v440
      %v442 = vpop.xlane.xlu0 %441
      %vm443 = vcmp.eq.f32.partialorder %v426, %v439
      %vm444 = vcmp.eq.f32.partialorder %v431, %v442
      %v445 = vsel %vm443, %v435, 8
      %v446 = vsel %vm444, %v435, 8
      %v447 = vsel %vm436, %v445, 2147483647
      %v448 = vand.u32 %v447, 65535
      %v449 = vshra.s32 %v447, 16
      %v450 = vcvt.s32.f32 %v448
      %v451 = vcvt.s32.f32 %v449
      %452 = vmin.xlane.f32.xlu0 %v451
      %v453 = vpop.xlane.xlu0 %452
      %vm454 = vcmp.eq.f32.partialorder %v451, %v453
      %v455 = vsel %vm454, %v450, inf
      %456 = vmin.xlane.f32.xlu0 %v455
      %v457 = vpop.xlane.xlu0 %456
      %v458 = vcvt.f32.s32 %v457
      %v459 = vcvt.f32.s32 %v453
      %v460 = vshll.u32 %v459, 16
      %v461 = vadd.s32 %v460, %v458
      %v462 = vsel %vm436, %v446, 2147483647
      %v463 = vand.u32 %v462, 65535
      %v464 = vshra.s32 %v462, 16
      %v465 = vcvt.s32.f32 %v463
      %v466 = vcvt.s32.f32 %v464
      %467 = vmin.xlane.f32.xlu0 %v466
      %v468 = vpop.xlane.xlu0 %467
      %vm469 = vcmp.eq.f32.partialorder %v466, %v468
      %v470 = vsel %vm469, %v465, inf
      %471 = vmin.xlane.f32.xlu0 %v470
      %v472 = vpop.xlane.xlu0 %471
      %v473 = vcvt.f32.s32 %v472
      %v474 = vcvt.f32.s32 %v468
      %v475 = vshll.u32 %v474, 16
      %v476 = vadd.s32 %v475, %v473
      %vm477 = vcmp.eq.s32.totalorder %v445, %v461
      %vm478 = vcmp.eq.s32.totalorder %v446, %v476
      %v479 = vadd.f32 %v439, %v301
      %v480 = vadd.f32 %v442, %v305
      %v481 = vmax.f32 %v479, 0.0
      %v482 = vmax.f32 %v480, 0.0
      %v483 = vmax.f32 %v481, 1e-10
      %v484 = vmax.f32 %v482, 1e-10
      %v485 = vrcp.pop %v483
      %v486 = vmul.f32 1.0, %v485
      %v487 = vrcp.pop %v484
      %v488 = vmul.f32 1.0, %v487
      %v489 = vadd.f32 %v486, 0.0
      %v490 = vadd.f32 %v488, 0.0
      %v491 = vsel %vm477, %v486, 0.0
      %v492 = vsel %vm478, %v488, 0.0
      %v493 = vadd.f32 %v491, 0.0
      %v494 = vadd.f32 %v492, 0.0
      %v495 = vsel %vm477, inf, %v426
      %v496 = vsel %vm478, inf, %v431
      %v497 = vsel %vm436, %v495, inf
      %498 = vmin.xlane.f32.xlu0 %v497
      %v499 = vpop.xlane.xlu0 %498
      %v500 = vsel %vm436, %v496, inf
      %501 = vmin.xlane.f32.xlu0 %v500
      %v502 = vpop.xlane.xlu0 %501
      %vm503 = vcmp.eq.f32.partialorder %v495, %v499
      %vm504 = vcmp.eq.f32.partialorder %v496, %v502
      %v505 = vsel %vm503, %v435, 8
      %v506 = vsel %vm504, %v435, 8
      %v507 = vsel %vm436, %v505, 2147483647
      %v508 = vand.u32 %v507, 65535
      %v509 = vshra.s32 %v507, 16
      %v510 = vcvt.s32.f32 %v508
      %v511 = vcvt.s32.f32 %v509
      %512 = vmin.xlane.f32.xlu0 %v511
      %v513 = vpop.xlane.xlu0 %512
      %vm514 = vcmp.eq.f32.partialorder %v511, %v513
      %v515 = vsel %vm514, %v510, inf
      %516 = vmin.xlane.f32.xlu0 %v515
      %v517 = vpop.xlane.xlu0 %516
      %v518 = vcvt.f32.s32 %v517
      %v519 = vcvt.f32.s32 %v513
      %v520 = vshll.u32 %v519, 16
      %v521 = vadd.s32 %v520, %v518
      %v522 = vsel %vm436, %v506, 2147483647
      %v523 = vand.u32 %v522, 65535
      %v524 = vshra.s32 %v522, 16
      %v525 = vcvt.s32.f32 %v523
      %v526 = vcvt.s32.f32 %v524
      %527 = vmin.xlane.f32.xlu0 %v526
      %v528 = vpop.xlane.xlu0 %527
      %vm529 = vcmp.eq.f32.partialorder %v526, %v528
      %v530 = vsel %vm529, %v525, inf
      %531 = vmin.xlane.f32.xlu0 %v530
      %v532 = vpop.xlane.xlu0 %531
      %v533 = vcvt.f32.s32 %v532
      %v534 = vcvt.f32.s32 %v528
      %v535 = vshll.u32 %v534, 16
      %v536 = vadd.s32 %v535, %v533
      %vm537 = vcmp.eq.s32.totalorder %v505, %v521
      %vm538 = vcmp.eq.s32.totalorder %v506, %v536
      %v539 = vadd.f32 %v499, %v301
      %v540 = vadd.f32 %v502, %v305
      %v541 = vmax.f32 %v539, 0.0
      %v542 = vmax.f32 %v540, 0.0
      %v543 = vmax.f32 %v541, 1e-10
      %v544 = vmax.f32 %v542, 1e-10
      %v545 = vrcp.pop %v543
      %v546 = vmul.f32 1.0, %v545
      %v547 = vrcp.pop %v544
      %v548 = vmul.f32 1.0, %v547
      %v549 = vadd.f32 %v489, %v546
      %v550 = vadd.f32 %v490, %v548
      %v551 = vsel %vm537, %v546, 0.0
      %v552 = vsel %vm538, %v548, 0.0
      %v553 = vadd.f32 %v493, %v551
      %v554 = vadd.f32 %v494, %v552
      %v555 = vsel %vm537, inf, %v495
      %v556 = vsel %vm538, inf, %v496
      %v557 = vsel %vm436, %v555, inf
      %558 = vmin.xlane.f32.xlu0 %v557
      %v559 = vpop.xlane.xlu0 %558
      %v560 = vsel %vm436, %v556, inf
      %561 = vmin.xlane.f32.xlu0 %v560
      %v562 = vpop.xlane.xlu0 %561
      %vm563 = vcmp.eq.f32.partialorder %v555, %v559
      %vm564 = vcmp.eq.f32.partialorder %v556, %v562
      %v565 = vsel %vm563, %v435, 8
      %v566 = vsel %vm564, %v435, 8
      %v567 = vsel %vm436, %v565, 2147483647
      %v568 = vand.u32 %v567, 65535
      %v569 = vshra.s32 %v567, 16
      %v570 = vcvt.s32.f32 %v568
      %v571 = vcvt.s32.f32 %v569
      %572 = vmin.xlane.f32.xlu0 %v571
      %v573 = vpop.xlane.xlu0 %572
      %vm574 = vcmp.eq.f32.partialorder %v571, %v573
      %v575 = vsel %vm574, %v570, inf
      %576 = vmin.xlane.f32.xlu0 %v575
      %v577 = vpop.xlane.xlu0 %576
      %v578 = vcvt.f32.s32 %v577
      %v579 = vcvt.f32.s32 %v573
      %v580 = vshll.u32 %v579, 16
      %v581 = vadd.s32 %v580, %v578
      %v582 = vsel %vm436, %v566, 2147483647
      %v583 = vand.u32 %v582, 65535
      %v584 = vshra.s32 %v582, 16
      %v585 = vcvt.s32.f32 %v583
      %v586 = vcvt.s32.f32 %v584
      %587 = vmin.xlane.f32.xlu0 %v586
      %v588 = vpop.xlane.xlu0 %587
      %vm589 = vcmp.eq.f32.partialorder %v586, %v588
      %v590 = vsel %vm589, %v585, inf
      %591 = vmin.xlane.f32.xlu0 %v590
      %v592 = vpop.xlane.xlu0 %591
      %v593 = vcvt.f32.s32 %v592
      %v594 = vcvt.f32.s32 %v588
      %v595 = vshll.u32 %v594, 16
      %v596 = vadd.s32 %v595, %v593
      %vm597 = vcmp.eq.s32.totalorder %v565, %v581
      %vm598 = vcmp.eq.s32.totalorder %v566, %v596
      %v599 = vadd.f32 %v559, %v301
      %v600 = vadd.f32 %v562, %v305
      %v601 = vmax.f32 %v599, 0.0
      %v602 = vmax.f32 %v600, 0.0
      %v603 = vmax.f32 %v601, 1e-10
      %v604 = vmax.f32 %v602, 1e-10
      %v605 = vrcp.pop %v603
      %v606 = vmul.f32 1.0, %v605
      %v607 = vrcp.pop %v604
      %v608 = vmul.f32 1.0, %v607
      %v609 = vadd.f32 %v549, %v606
      %v610 = vadd.f32 %v550, %v608
      %v611 = vsel %vm597, %v606, 0.0
      %v612 = vsel %vm598, %v608, 0.0
      %v613 = vadd.f32 %v553, %v611
      %v614 = vadd.f32 %v554, %v612
      %v615 = vrcp.pop %v609
      %v616 = vrcp.pop %v610
      %v617 = vmul.f32 %v613, %v615
      %v618 = vmul.f32 %v614, %v616
      %v619 = vld [vmem:[%s272] sm:$0x3f]
      %v621 = vsel %vm436, %v619, 0
      %v624 = vsel %vm436, %v617, 0
      %v627 = vsel %vm436, %v618, 0
      %629 = vmatprep.subr.mxu0 0.0
      %630 = vmatpush1.xpose.msra.mxu0 %v624
      %631 = vmatprep.subr.mxu0 0.0
      %632 = vmatpush1.xpose.msra.mxu0 %v627
      %633 = vmatprep.subr.mxu0 0.0
      %634 = vmatpush1.xpose.msra.mxu0 0.0
      %635 = vmatprep.subr.mxu0 0.0
      %636 = vmatpush1.xpose.msra.mxu0 0.0
      %637 = vmatprep.subr.mxu0 0.0
      %638 = vmatpush1.xpose.msra.mxu0 0.0
      %639 = vmatprep.subr.mxu0 0.0
      %640 = vmatpush1.xpose.msra.mxu0 0.0
      %641 = vmatprep.subr.mxu0 0.0
      %642 = vmatpush1.xpose.msra.mxu0 0.0
      %643 = vmatprep.subr.mxu0 0.0
      %644 = vmatpush1.xpose.msra.mxu0 0.0
      %645 = vmatprep.subr.mxu0 0.0
      %646 = vmatpush1.xpose.msra.mxu0 0.0
      %647 = vmatprep.subr.mxu0 0.0
      %648 = vmatpush1.xpose.msra.mxu0 0.0
      %649 = vmatprep.subr.mxu0 0.0
      %650 = vmatpush1.xpose.msra.mxu0 0.0
      %651 = vmatprep.subr.mxu0 0.0
      %652 = vmatpush1.xpose.msra.mxu0 0.0
      %653 = vmatprep.subr.mxu0 0.0
      %654 = vmatpush1.xpose.msra.mxu0 0.0
      %655 = vmatprep.subr.mxu0 0.0
      %656 = vmatpush1.xpose.msra.mxu0 0.0
      %657 = vmatprep.subr.mxu0 0.0
      %658 = vmatpush1.xpose.msra.mxu0 0.0
      %659 = vmatprep.subr.mxu0 0.0
      %660 = vmatpush1.xpose.msra.mxu0 0.0
      %661 = vmatprep.subr.mxu0 0.0
      %662 = vmatpush1.xpose.msra.mxu0 0.0
      %663 = vmatprep.subr.mxu0 0.0
      %664 = vmatpush1.xpose.msra.mxu0 0.0
      %665 = vmatprep.subr.mxu0 0.0
      %666 = vmatpush1.xpose.msra.mxu0 0.0
      %667 = vmatprep.subr.mxu0 0.0
      %668 = vmatpush1.xpose.msra.mxu0 0.0
      %669 = vmatprep.subr.mxu0 0.0
      %670 = vmatpush1.xpose.msra.mxu0 0.0
      %671 = vmatprep.subr.mxu0 0.0
      %672 = vmatpush1.xpose.msra.mxu0 0.0
      %673 = vmatprep.subr.mxu0 0.0
      %674 = vmatpush1.xpose.msra.mxu0 0.0
      %675 = vmatprep.subr.mxu0 0.0
      %676 = vmatpush1.xpose.msra.mxu0 0.0
      %677 = vmatprep.subr.mxu0 0.0
      %678 = vmatpush1.xpose.msra.mxu0 0.0
      %679 = vmatprep.subr.mxu0 0.0
      %680 = vmatpush1.xpose.msra.mxu0 0.0
      %681 = vmatprep.subr.mxu0 0.0
      %682 = vmatpush1.xpose.msra.mxu0 0.0
      %683 = vmatprep.subr.mxu0 0.0
      %684 = vmatpush1.xpose.msra.mxu0 0.0
      %685 = vmatprep.subr.mxu0 0.0
      %686 = vmatpush1.xpose.msra.mxu0 0.0
      %687 = vmatprep.subr.mxu0 0.0
      %688 = vmatpush1.xpose.msra.mxu0 0.0
      %689 = vmatprep.subr.mxu0 0.0
      %690 = vmatpush1.xpose.msra.mxu0 0.0
      %691 = vmatprep.subr.mxu0 0.0
      %692 = vmatpush1.xpose.msra.mxu0 0.0
      %693 = vmatprep.mubr.f32.mxu0 0.0
      %694 = vmatmul.mubr.f32.gmra.mrb[0].mxu0 %v621
      %v695 = vpop.f32.mrb[0].mxu0
      %v696 = vadd.f32 0.0, %v695
      %v697 = vpop.f32.mrb[0].mxu0
      %698 = vdwg.mxu0
      %vm699 = vcmask 128000
      %700 = vst.msk [vmem:[%s287] sm:$0x3f] %vm699, %v696
      %v701 = vld [vmem:[%s279] sm:$0xf]
      %vm702 = vcmask 125952
      %703 = vst.msk [vmem:[%s287 + $0x6] sm:$0xf] %vm702, %v701
      %p704 = scmp.lt.s32.totalorder %s19, 1
      %s705 = scalar_select %p704, %s19, 1
      %p706 = scmp.lt.s32.totalorder %s20, 0
      %s707 = scalar_select %p706, %s20, 0
      %s708 = smul.addr %s705, 2
      %s709 = sadd.s32 %s707, %s708
      %s710 = smul.addr %s709, 8
      %s711 = scalar_lea.vmem %s4, %s710
      // Predicated region
      $region37: #{tpu_custom_call.1} parent=35 // pred_check
        %p712 = pneg %p155
      $region38: #{tpu_custom_call.1} parent=35 // pred_check_branch
        %714 = sbr.rel (%p712) target = $region40
      $region39: #{tpu_custom_call.1} parent=35 // pred_region
        _
      $region40: #{tpu_custom_call.1} parent=35 // pred_fallthru
        _
    $region36: #{tpu_custom_call.1} parent=5 // pred_fallthru
      _
    %p715 = scmp.le.s32.totalorder 2, %s10
    // Predicated region
    $region41: #{tpu_custom_call.1} parent=5 // pred_check
      %p716 = pneg %p715
    $region42: #{tpu_custom_call.1} parent=5 // pred_check_branch
      %718 = sbr.rel (%p716) target = $region44
    $region43: #{tpu_custom_call.1} parent=5 // pred_region
      %s719 = ssub.s32 %s10, 2
      // Predicated region
      $region45: #{tpu_custom_call.1} parent=43 // pred_check
        %p720 = pneg %p161
      $region46: #{tpu_custom_call.1} parent=43 // pred_check_branch
        %722 = sbr.rel (%p720) target = $region48
      $region47: #{tpu_custom_call.1} parent=43 // pred_region
        %p723 = scmp.lt.s32.totalorder %s21, 1
        %s724 = scalar_select %p723, %s21, 1
        %p725 = scmp.lt.s32.totalorder %s22, 0
        %s726 = scalar_select %p725, %s22, 0
        %s727 = smul.addr %s724, 2
        %s728 = sadd.s32 %s726, %s727
        %s729 = smul.addr %s728, 8
        %s730 = scalar_lea.vmem %s4, %s729
      $region48: #{tpu_custom_call.1} parent=43 // pred_fallthru
        _
    $region44: #{tpu_custom_call.1} parent=5 // pred_fallthru
      _
  $region6: #{tpu_custom_call.1} parent=0 // loop_footer
    %s14 = sadd.s32 1, %s10
  $region7: #{tpu_custom_call.1} parent=0 // loop_footer_branch
    %9 = sbr.rel target = $region3
  $region8: #{tpu_custom_call.1} parent=0 // loop_exit
    _

</llo_original>
